<compile_context>
chip_gen: v5e
topology: v5e:2x2
jax: 0.10.0
libtpu: 0.0.40
codegen_flags: <defaults>
</compile_context>

<pallas_src>
import math
import numpy as np
import jax
import jax.numpy as jnp
from jax.experimental import pallas as pl
from jax.experimental.pallas import tpu as pltpu


# ----------------------------------------------------------------------------
# Filter construction (glue, deterministic, numpy)
# ----------------------------------------------------------------------------
def _morlet_1d(freq: float, sr: float, q: float, reflect: bool = False,
               n_sig: float = 3.0):
    """Complex Morlet filter at center frequency `freq`, sampled at rate `sr`."""
    # TODO(synk): exact MorletWavelet normalization / zero-mean correction of the
    # original repo is approximated with an L1-normalized Gaussian envelope.
    sigma = q / (math.pi * freq)
    half = max(int(math.ceil(n_sig * sigma * sr)), 1)
    t = (np.arange(2 * half + 1, dtype=np.float64) - half) / sr
    gauss = np.exp(-t ** 2 / (2.0 * sigma ** 2))
    omega = 2.0 * math.pi * freq * (-1.0 if reflect else 1.0)
    norm = 1.0 / (math.sqrt(2.0 * math.pi) * sigma * sr)
    wr = (norm * gauss * np.cos(omega * t)).astype(np.float32)
    wi = (norm * gauss * np.sin(omega * t)).astype(np.float32)
    return wr, wi


def _pad_center(w: np.ndarray, k: int) -> np.ndarray:
    pad = k - len(w)
    left = pad // 2
    return np.pad(w, (left, pad - left)).astype(np.float32)


def _toeplitz_corr(w: np.ndarray, n: int) -> np.ndarray:
    """M[out, in] = w[in - out + K//2]   ('same' zero-padded cross-correlation)."""
    k = len(w)
    pad = k // 2
    i = np.arange(n)[:, None]
    j = np.arange(n)[None, :]
    idx = j - i + pad
    mask = (idx >= 0) & (idx < k)
    return np.where(mask, w[np.clip(idx, 0, k - 1)], 0.0).astype(np.float32)


def _avg_matrix(n: int, win: int, should_avg: bool) -> np.ndarray:
    """Gaussian lowpass + subsample-by-`win`, expressed as a dense (n_out, n) matrix."""
    if not should_avg:
        return np.eye(n, dtype=np.float32)
    # TODO(synk): original repo derives the lowpass phi from the lowest wavelet
    # frequency; here it is a unit-sum Gaussian of width win/2.
    sigma = max(win / 2.0, 1e-3)
    half = int(math.ceil(3.0 * sigma))
    k = np.arange(-half, half + 1, dtype=np.float64)
    phi = np.exp(-k ** 2 / (2.0 * sigma ** 2))
    phi = (phi / phi.sum()).astype(np.float32)
    n_out = int(math.ceil(n / win))
    i = np.arange(n_out)[:, None] * win
    j = np.arange(n)[None, :]
    idx = j - i + half
    mask = (idx >= 0) & (idx < len(phi))
    return np.where(mask, phi[np.clip(idx, 0, len(phi) - 1)], 0.0).astype(np.float32)


def _round_up(x: int, m: int) -> int:
    return ((x + m - 1) // m) * m


# ----------------------------------------------------------------------------
# Pallas kernels (the hot path)
# ----------------------------------------------------------------------------
def _scat1_kernel(p_ref, w_ref, o_ref):
    """First-order scattering with time in the lane axis:
       one (2*F1, K) @ (K, T) bf16 matmul gives stacked [real; imag]; modulus on VPU."""
    f1 = o_ref.shape[1]
    y = jnp.dot(w_ref[...], p_ref[0], preferred_element_type=jnp.float32)   # (2*F1, T)
    re = y[:f1]
    im = y[f1:]
    o_ref[0] = jnp.sqrt(re * re + im * im)                                   # (F1, T)


def _jtfst_kernel(s_ref, ct_ref, cf_ref, af_ref, att_ref, o_ref, y_s):
    """One (batch, time-wavelet, freq-wavelet) grid step.

    The time conv is computed only when the innermost freq-wavelet axis restarts
    (pl.program_id(2)==0) and cached in VMEM scratch `y_s` as [yr | yi] (bf16);
    it is reused for all n_f frequency wavelets of this (batch, time-wavelet)."""
    F = s_ref.shape[1]
    T = s_ref.shape[2]

    @pl.when(pl.program_id(2) == 0)
    def _():
        # (F, T) @ (T, 2T) -> [S@Ct_r^T | S@Ct_i^T]
        y = jnp.dot(s_ref[0], ct_ref[0], preferred_element_type=jnp.float32)
        y_s[...] = y.astype(jnp.bfloat16)

    # joint freq conv: one (2F, F) @ (F, 2T) matmul covers all four real/imag products
    z = jnp.dot(cf_ref[0], y_s[...], preferred_element_type=jnp.float32)     # (2F, 2T)
    zr = z[:F, :T] - z[F:, T:]
    zi = z[:F, T:] + z[F:, :T]
    u2 = jnp.sqrt(zr * zr + zi * zi)                                         # (F, T) f32

    # averaging (lowpass + subsample), freq then time; padded rows/cols are zero.
    avg_f = jnp.dot(af_ref[...], u2.astype(jnp.bfloat16),
                    preferred_element_type=jnp.float32)                      # (F_out_p, T)
    o_ref[0, 0] = jnp.dot(avg_f.astype(jnp.bfloat16), att_ref[...],
                          preferred_element_type=jnp.float32)                # (F_out_p, T_out_p)


# ----------------------------------------------------------------------------
# Module
# ----------------------------------------------------------------------------
class JTFST2D:
    def __init__(self, sr, J_1=12, J_2_f=4, J_2_t=12, Q_1=16, Q_2_f=1, Q_2_t=1,
                 should_avg_f=True, should_avg_t=True,
                 avg_win_f=None, avg_win_t=None, reflect_f=True):
        self.sr = float(sr)
        self.should_avg_f = should_avg_f
        self.should_avg_t = should_avg_t
        self.avg_win_f = avg_win_f if avg_win_f is not None else 2 ** J_2_f
        self.avg_win_t = avg_win_t if avg_win_t is not None else 2 ** J_2_t

        # ----- first order (ScatTransform1D, should_avg=False, squeeze_channels) -----
        self.freqs_1 = [self.sr / 2.0 * 2.0 ** (-(k + 1) / Q_1) for k in range(J_1 * Q_1)]
        filt1 = [_morlet_1d(f, self.sr, Q_1) for f in self.freqs_1]
        k1 = max(len(wr) for wr, _ in filt1)
        self.K1 = k1
        self.F1 = len(self.freqs_1)
        wr_rows = np.stack([_pad_center(wr, k1) for wr, _ in filt1], axis=0)   # (F1, K1)
        wi_rows = np.stack([_pad_center(wi, k1) for _, wi in filt1], axis=0)   # (F1, K1)
        # concatenated real/imag bank -> a single MXU matmul per batch in _scat1
        self.W1 = jnp.asarray(np.concatenate([wr_rows, wi_rows], axis=0),
                              jnp.bfloat16)                                    # (2*F1, K1)

        # ----- second order (ScatTransform2DSubsampling) -----
        # TODO(synk): original repo subsamples per-path dyadically; here a single
        # avg_win_f / avg_win_t lowpass+subsample is applied to every path.
        self.freqs_t = [self.sr / 2.0 * 2.0 ** (-(k + 1) / Q_2_t)
                        for k in range(J_2_t * Q_2_t)]
        freqs_f_base = [0.5 * 2.0 ** (-(k + 1) / Q_2_f) for k in range(J_2_f * Q_2_f)]
        spins = [1, -1] if reflect_f else [1]
        self.freqs_f_spin = [(ff, s) for ff in freqs_f_base for s in spins]
        self.n_t = len(self.freqs_t)
        self.n_f = len(self.freqs_f_spin)
        # freqs_2 : List[(freq_f, freq_t, orientation)]
        self.freqs_2 = [(ff, ft, s) for ft in self.freqs_t for (ff, s) in self.freqs_f_spin]

        self.time_filters = [_morlet_1d(f, self.sr, Q_2_t) for f in self.freqs_t]
        self.freq_filters = [_morlet_1d(ff, 1.0, Q_2_f, reflect=(s < 0))
                             for (ff, s) in self.freqs_f_spin]

    # ---------------- first-order scattering ----------------
    def _scat1(self, xs):
        B, T = xs.shape
        K, F1 = self.K1, self.F1
        pad = K // 2
        xp = jnp.pad(xs, ((0, 0), (pad, K - 1 - pad)))
        # TODO(synk): at production K1 (1e4-1e5 taps) replace this im2col with a
        # K-chunked grid axis + in-kernel pl.ds windows to avoid the O(K1) HBM blowup.
        idx = jnp.arange(K)[:, None] + jnp.arange(T)[None, :]
        patches = xp[:, idx].astype(jnp.bfloat16)                  # (B, K, T)
        out = pl.pallas_call(
            _scat1_kernel,
            out_shape=jax.ShapeDtypeStruct((B, F1, T), jnp.float32),
            grid=(B,),
            in_specs=[pl.BlockSpec((1, K, T), lambda b: (b, 0, 0)),
                      pl.BlockSpec((2 * F1, K), lambda b: (0, 0))],
            out_specs=pl.BlockSpec((1, F1, T), lambda b: (b, 0, 0)),
            compiler_params=pltpu.CompilerParams(dimension_semantics=("parallel",)),
        )(patches, self.W1)
        return out                                                 # (B, F1, T), lane = time

    # ---------------- second-order joint scattering ----------------
    def _scat2(self, scalogram):
        B, F, T = scalogram.shape
        # stacked time-conv operators: Y = S @ [Ct_r^T | Ct_i^T] -> (F, 2T) = [yr | yi]
        # TODO(synk): dense (T, 2T) Toeplitz; switch to a banded / T-chunked contraction
        # for long audio to avoid O(T^2) FLOPs and VMEM.
        ct = np.stack([np.concatenate([_toeplitz_corr(wr, T).T,
                                       _toeplitz_corr(wi, T).T], axis=1)
                       for wr, wi in self.time_filters])           # (n_t, T, 2T)
        # stacked freq-conv operators: Z = [Cf_r ; Cf_i] @ [yr | yi] -> (2F, 2T)
        cf = np.stack([np.concatenate([_toeplitz_corr(wr, F),
                                       _toeplitz_corr(wi, F)], axis=0)
                       for wr, wi in self.freq_filters])           # (n_f, 2F, F)
        a_f = _avg_matrix(F, self.avg_win_f, self.should_avg_f)    # (F_out, F)
        a_tT = _avg_matrix(T, self.avg_win_t, self.should_avg_t).T  # (T, T_out)
        F_out, T_out = a_f.shape[0], a_tT.shape[1]

        # lane/sublane-dense output tiles (unmasked stores): pad F_out->8k, T_out->128k
        F_out_p = _round_up(F_out, 8)
        T_out_p = _round_up(T_out, 128)
        a_f_p = np.pad(a_f, ((0, F_out_p - F_out), (0, 0)))
        a_tT_p = np.pad(a_tT, ((0, 0), (0, T_out_p - T_out)))

        n_t, n_f = self.n_t, self.n_f
        n_paths = n_t * n_f

        jtfst_p = pl.pallas_call(
            _jtfst_kernel,
            out_shape=jax.ShapeDtypeStruct((B, n_paths, F_out_p, T_out_p), jnp.float32),
            grid=(B, n_t, n_f),
            in_specs=[
                pl.BlockSpec((1, F, T), lambda b, ti, fi: (b, 0, 0)),        # scalogram (bf16)
                pl.BlockSpec((1, T, 2 * T), lambda b, ti, fi: (ti, 0, 0)),   # [Ct_r^T | Ct_i^T]
                pl.BlockSpec((1, 2 * F, F), lambda b, ti, fi: (fi, 0, 0)),   # [Cf_r ; Cf_i]
                pl.BlockSpec((F_out_p, F), lambda b, ti, fi: (0, 0)),        # A_f (padded)
                pl.BlockSpec((T, T_out_p), lambda b, ti, fi: (0, 0)),        # A_t^T (padded)
            ],
            out_specs=pl.BlockSpec((1, 1, F_out_p, T_out_p),
                                   lambda b, ti, fi: (b, ti * n_f + fi, 0, 0)),
            scratch_shapes=[pltpu.VMEM((F, 2 * T), jnp.bfloat16)],           # cached [yr|yi]
            compiler_params=pltpu.CompilerParams(
                dimension_semantics=("parallel", "arbitrary", "arbitrary"),
                vmem_limit_bytes=48 * 1024 * 1024),
        )(scalogram.astype(jnp.bfloat16),
          jnp.asarray(ct, jnp.bfloat16), jnp.asarray(cf, jnp.bfloat16),
          jnp.asarray(a_f_p, jnp.bfloat16), jnp.asarray(a_tT_p, jnp.bfloat16))
        # strip the lane/sublane padding
        return jtfst_p[:, :, :F_out, :T_out]

    # ---------------- forward ----------------
    def __call__(self, x):
        x = jnp.asarray(x, jnp.float32)
        assert x.ndim == 3 and x.shape[1] == 1, "expected (B, 1, T) audio"
        xs = x[:, 0, :]                                            # squeeze_channels=True
        scalogram = self._scat1(xs)                                # (B, F1, T)
        jtfst = self._scat2(scalogram)                             # (B, n_paths, F_out, T_out)
        return scalogram, self.freqs_1, jtfst, self.freqs_2


# ----------------------------------------------------------------------------
if __name__ == "__main__":
    sr = 4096.0
    # Small, consistent hyper-parameters for the demo (constructor args).
    model = JTFST2D(sr=sr, J_1=4, J_2_f=2, J_2_t=2, Q_1=4, Q_2_f=1, Q_2_t=1)

    key = jax.random.PRNGKey(0)
    x = jax.random.normal(key, (2, 1, 256), dtype=jnp.float32)     # (B, C=1, T)

    scalogram, freqs_1, jtfst, freqs_2 = model(x)
    jax.block_until_ready(scalogram)
    jax.block_until_ready(jtfst)

    assert scalogram.shape == (2, 16, 256)
    assert jtfst.shape[0] == 2 and jtfst.shape[1] == len(freqs_2)
    print("KERNEL_OK")
</pallas_src>

<mosaic_0001>
module attributes {stable_mosaic.version = 11 : i64} {
  func.func @_scat1_kernel(%arg0: i32, %arg1: memref<1x247x256xbf16, #tpu.memory_space<vmem>>, %arg2: memref<32x247xbf16, #tpu.memory_space<vmem>>, %arg3: memref<1x16x256xf32, #tpu.memory_space<vmem>>) attributes {dimension_semantics = [#tpu.dimension_semantics<parallel>], iteration_bounds = array<i64: 2>, scalar_prefetch = 0 : i64, scratch_operands = 0 : i64, tpu.core_type = #tpu.core_type<tc>, window_params = [{transform_indices = @transform_0, window_bounds = array<i64: 1, 247, 256>}, {pipeline_mode = #tpu.pipeline_mode<synchronous>, transform_indices = @transform_1, window_bounds = array<i64: 32, 247>}, {transform_indices = @transform_2, window_bounds = array<i64: 1, 16, 256>}]} {
    %c0 = arith.constant 0 : index
    %c0_0 = arith.constant 0 : index
    %0 = vector.load %arg2[%c0, %c0_0] : memref<32x247xbf16, #tpu.memory_space<vmem>>, vector<32x247xbf16>
    %c0_1 = arith.constant 0 : index
    %c0_2 = arith.constant 0 : index
    %c0_3 = arith.constant 0 : index
    %1 = vector.load %arg1[%c0_1, %c0_2, %c0_3] : memref<1x247x256xbf16, #tpu.memory_space<vmem>>, vector<1x247x256xbf16>
    %2 = vector.shape_cast %1 : vector<1x247x256xbf16> to vector<247x256xbf16>
    %cst = arith.constant dense<0.000000e+00> : vector<32x256xf32>
    %3 = tpu.matmul %0, %2, %cst {dimension_numbers = #tpu.dot_dimension_numbers<[1], [0], [0], [1], [0, 0, 1, 1], [], []>} : vector<32x247xbf16>, vector<247x256xbf16>, vector<32x256xf32> -> vector<32x256xf32>
    %4 = vector.extract_strided_slice %3 {offsets = [0, 0], sizes = [16, 256], strides = [1, 1]} : vector<32x256xf32> to vector<16x256xf32>
    %5 = vector.extract_strided_slice %3 {offsets = [16, 0], sizes = [16, 256], strides = [1, 1]} : vector<32x256xf32> to vector<16x256xf32>
    %6 = arith.mulf %4, %4 : vector<16x256xf32>
    %7 = arith.mulf %5, %5 : vector<16x256xf32>
    %8 = arith.addf %6, %7 : vector<16x256xf32>
    %9 = math.sqrt %8 : vector<16x256xf32>
    %c0_4 = arith.constant 0 : index
    %c0_5 = arith.constant 0 : index
    %c0_6 = arith.constant 0 : index
    %10 = vector.load %arg3[%c0_4, %c0_5, %c0_6] : memref<1x16x256xf32, #tpu.memory_space<vmem>>, vector<1x16x256xf32>
    %11 = vector.shape_cast %10 : vector<1x16x256xf32> to vector<16x256xf32>
    %12 = vector.shape_cast %9 : vector<16x256xf32> to vector<1x16x256xf32>
    tpu.vector_store %arg3[%c0_4, %c0_5, %c0_6], %12 {strides = array<i32>} : memref<1x16x256xf32, #tpu.memory_space<vmem>>, vector<1x16x256xf32>,
    return
  }
  func.func @transform_0(%arg0: i32) -> (i32, i32, i32) {
    %c0_i32 = arith.constant 0 : i32
    %c0_i32_0 = arith.constant 0 : i32
    %c0_i32_1 = arith.constant 0 : i32
    return %arg0, %c0_i32, %c0_i32_0 : i32, i32, i32
  }
  func.func @transform_1(%arg0: i32) -> (i32, i32) {
    %c0_i32 = arith.constant 0 : i32
    %c0_i32_0 = arith.constant 0 : i32
    %c0_i32_1 = arith.constant 0 : i32
    return %c0_i32, %c0_i32_0 : i32, i32
  }
  func.func @transform_2(%arg0: i32) -> (i32, i32, i32) {
    %c0_i32 = arith.constant 0 : i32
    %c0_i32_0 = arith.constant 0 : i32
    %c0_i32_1 = arith.constant 0 : i32
    return %arg0, %c0_i32, %c0_i32_0 : i32, i32, i32
  }
}

</mosaic_0001>

<llo_original>
// kernel: tpu_custom_call.1
$region0: #{tpu_custom_call.1}
  #allocation0 [shape = 'u32[]', space=smem, size = 0x4, offset = 0x4, fixed_abs, tag = 'smem constant byte address 0x4 - core index']
  #allocation1 [shape = 'u32[72,128]{1,0:T(1,128)}', space=vmem, size = 0x9000, scoped, tag = 'internal scratch']
  %s0 = inlined_call_operand.vmem [shape: bf16[2,247,256], index: 0, kind: input, shape index: {}]
  %s1 = inlined_call_operand.vmem [shape: bf16[32,247], index: 1, kind: input, shape index: {}]
  %s2 = inlined_call_operand.hbm [shape: f32[2,16,256], index: 2, kind: output, shape index: {}]
  %s3 = sld [smem:[#allocation0]]
  $region41: #{tpu_custom_call.1} parent=0
    _
  %s5 = ssub.s32 1, %s3
  %s6 = scalar_select 0, %s5, %s3
  $region1: #{tpu_custom_call.1} parent=0
    #allocation2 [shape = 'u8[32768]{0}', space=vmem, size = 0x8000, scoped, tag = 'output window, operand 0']
    #allocation3 [shape = 's32[2]{0}', space=sflag, size = 0x8, scoped, tag = 'scoped memory for tpu_custom_call.1']
    %7 = vsyncpa [#allocation3], 0
    %s8 = scalar_lea.sflag [#allocation3], 1
    %9 = vsyncpa %s8, 0
    loop: start=0, step=1, limit=4
    $region2: #{tpu_custom_call.1} parent=1 // loop_pre_header
      _
    $region3: #{tpu_custom_call.1} parent=1 // loop_header
      %s11 = sphi 0, %s15
      %p12 = scmp.ge.s32.totalorder %s11, 4
      %s21 = sphi 0, %s23
      %s24 = sphi 0, %s21
      %s25 = sphi 0, %s24
      %s41 = sphi 0, %s25
      %s45 = sphi 0, %s45
      %s47 = sphi 0, %s45
      %s48 = sphi 0, %s47
      %s62 = sphi 0, %s48
      %s68 = sphi 0, %s70
      %s71 = sphi 0, %s68
      %s72 = sphi 0, %s71
      %s88 = sphi 0, %s72
    $region4: #{tpu_custom_call.1} parent=1 // loop_header_branch
      %14 = sbr.rel (%p12) target = $region8
    $region5: #{tpu_custom_call.1} parent=1 // loop_body
      %s16 = ssub.s32 %s11, 1
      %s17 = ssub.s32 %s11, 2
      %s18 = sadd.s32 %s11, 1
      %s19 = ssub.s32 %s11, %s18
      %p20 = scmp.eq.s32.totalorder %s19, 0
      %s22 = sadd.s32 %s21, 1
      %s23 = scalar_select %p20, %s21, %s22
      %p26 = pneg %p20
      %p27 = scmp.eq.s32.totalorder %s11, 1
      %p28 = por %p26, %p27
      %p29 = scmp.ne.s32.totalorder %s21, %s24
      %p30 = scmp.eq.s32.totalorder %s11, 0
      %p31 = por %p29, %p30
      %p32 = scmp.ne.s32.totalorder %s21, %s24
      %p33 = scmp.eq.s32.totalorder %s16, 1
      %p34 = por %p32, %p33
      %p35 = scmp.ne.s32.totalorder %s24, %s25
      %p36 = scmp.eq.s32.totalorder %s16, 0
      %p37 = por %p35, %p36
      %p38 = scmp.ne.s32.totalorder %s24, %s25
      %p39 = scmp.eq.s32.totalorder %s17, 1
      %p40 = por %p38, %p39
      %p42 = scmp.ne.s32.totalorder %s25, %s41
      %p43 = scmp.eq.s32.totalorder %s17, 0
      %p44 = por %p42, %p43
      %s46 = sadd.s32 %s45, 1
      %p49 = scmp.eq.s32.totalorder %s11, 1
      %p50 = scmp.ne.s32.totalorder %s45, %s47
      %p51 = scmp.eq.s32.totalorder %s11, 0
      %p52 = por %p50, %p51
      %p53 = scmp.ne.s32.totalorder %s45, %s47
      %p54 = scmp.eq.s32.totalorder %s16, 1
      %p55 = por %p53, %p54
      %p56 = scmp.ne.s32.totalorder %s47, %s48
      %p57 = scmp.eq.s32.totalorder %s16, 0
      %p58 = por %p56, %p57
      %p59 = scmp.ne.s32.totalorder %s47, %s48
      %p60 = scmp.eq.s32.totalorder %s17, 1
      %p61 = por %p59, %p60
      %p63 = scmp.ne.s32.totalorder %s48, %s62
      %p64 = scmp.eq.s32.totalorder %s17, 0
      %p65 = por %p63, %p64
      %s66 = ssub.s32 %s11, %s18
      %p67 = scmp.eq.s32.totalorder %s66, 0
      %s69 = sadd.s32 %s68, 1
      %s70 = scalar_select %p67, %s68, %s69
      %p73 = pneg %p67
      %p74 = scmp.eq.s32.totalorder %s11, 1
      %p75 = por %p73, %p74
      %p76 = scmp.ne.s32.totalorder %s68, %s71
      %p77 = scmp.eq.s32.totalorder %s11, 0
      %p78 = por %p76, %p77
      %p79 = scmp.ne.s32.totalorder %s68, %s71
      %p80 = scmp.eq.s32.totalorder %s16, 1
      %p81 = por %p79, %p80
      %p82 = scmp.ne.s32.totalorder %s71, %s72
      %p83 = scmp.eq.s32.totalorder %s16, 0
      %p84 = por %p82, %p83
      %p85 = scmp.ne.s32.totalorder %s71, %s72
      %p86 = scmp.eq.s32.totalorder %s17, 1
      %p87 = por %p85, %p86
      %p89 = scmp.ne.s32.totalorder %s72, %s88
      %p90 = scmp.eq.s32.totalorder %s17, 0
      %p91 = por %p89, %p90
      %p92 = scmp.le.s32.totalorder 1, %s11
      %p93 = scmp.lt.s32.totalorder %s11, 3
      %p94 = pnand %p92, %p93
      %p95 = pneg %p94
      // Predicated region
      $region9: #{tpu_custom_call.1} parent=5 // pred_check
        _
      $region10: #{tpu_custom_call.1} parent=5 // pred_check_branch
        %97 = sbr.rel (%p94) target = $region12
      $region11: #{tpu_custom_call.1} parent=5 // pred_region
        %s98 = ssub.s32 %s11, 1
        // Predicated region
        $region13: #{tpu_custom_call.1} parent=11 // pred_check
          %p99 = pneg %p58
        $region14: #{tpu_custom_call.1} parent=11 // pred_check_branch
          %101 = sbr.rel (%p99) target = $region16
        $region15: #{tpu_custom_call.1} parent=11 // pred_region
          _
        $region16: #{tpu_custom_call.1} parent=11 // pred_fallthru
          _
      $region12: #{tpu_custom_call.1} parent=5 // pred_fallthru
        _
      %p102 = scmp.lt.s32.totalorder %s11, 2
      // Predicated region
      $region17: #{tpu_custom_call.1} parent=5 // pred_check
        %p103 = pneg %p102
      $region18: #{tpu_custom_call.1} parent=5 // pred_check_branch
        %105 = sbr.rel (%p103) target = $region20
      $region19: #{tpu_custom_call.1} parent=5 // pred_region
        // Predicated region
        $region21: #{tpu_custom_call.1} parent=19 // pred_check
          %p106 = pneg %p31
        $region22: #{tpu_custom_call.1} parent=19 // pred_check_branch
          %108 = sbr.rel (%p106) target = $region24
        $region23: #{tpu_custom_call.1} parent=19 // pred_region
          %p109 = scmp.lt.s32.totalorder %s11, 1
          %s110 = scalar_select %p109, %s11, 1
          %s111 = smul.addr %s110, 62
          %s112 = smul.addr %s111, 4
          %s113 = scalar_lea.vmem %s0, %s112
        $region24: #{tpu_custom_call.1} parent=19 // pred_fallthru
          _
      $region20: #{tpu_custom_call.1} parent=5 // pred_fallthru
        _
      %p114 = scmp.le.s32.totalorder 1, %s11
      %p115 = scmp.lt.s32.totalorder %s11, 3
      %p116 = pnand %p114, %p115
      %p117 = pneg %p116
      // Predicated region
      $region25: #{tpu_custom_call.1} parent=5 // pred_check
        _
      $region26: #{tpu_custom_call.1} parent=5 // pred_check_branch
        %119 = sbr.rel (%p116) target = $region28
      $region27: #{tpu_custom_call.1} parent=5 // pred_region
        %s120 = ssub.s32 %s11, 1
        %p121 = scmp.lt.s32.totalorder %s16, 1
        %s122 = scalar_select %p121, %s16, 1
        %s123 = smul.addr %s122, 62
        %s124 = smul.addr %s123, 4
        %s125 = scalar_lea.vmem %s0, %s124
        %p126 = pneg %p37
        %p127 = pneg %p34
        %p128 = pneg %p58
        %p129 = pneg %p55
        %p130 = pneg %p84
        %p131 = pneg %p81
        %s132 = sand.u32 %s71, 1
        %s133 = scalar_lea.sflag [#allocation3], %s132
        %s134 = sand.u32 %s71, 1
        %s135 = smul.addr %s134, 32
        %s136 = scalar_lea.vmem [#allocation2], %s135
        %p137 = scmp.lt.s32.totalorder %s16, 1
        %s138 = scalar_select %p137, %s16, 1
        %s139 = smul.addr %s138, 62
        %s140 = smul.addr %s139, 4
        %s141 = scalar_lea.vmem %s0, %s140
        %v142 = vld [vmem:[%s1] sm:$0xff]
        %v143 = vld [vmem:[%s1 + $0x8] sm:$0xff]
        %v144 = vld [vmem:[%s1 + $0x10] sm:$0xff]
        %v145 = vld [vmem:[%s1 + $0x18] sm:$0xff]
        %v146 = vld [vmem:[%s141] sm:$0xff]
        %v147 = vld [vmem:[%s141 + $0x8] sm:$0xff]
        %v148 = vld [vmem:[%s141 + $0x10] sm:$0xff]
        %v149 = vld [vmem:[%s141 + $0x18] sm:$0xff]
        %v150 = vld [vmem:[%s141 + $0x20] sm:$0xff]
        %v151 = vld [vmem:[%s141 + $0x28] sm:$0xff]
        %v152 = vld [vmem:[%s141 + $0x30] sm:$0xff]
        %v153 = vld [vmem:[%s141 + $0x38] sm:$0xff]
        %v154 = vld [vmem:[%s141 + $0x40] sm:$0xff]
        %v155 = vld [vmem:[%s141 + $0x48] sm:$0xff]
        %v156 = vld [vmem:[%s141 + $0x50] sm:$0xff]
        %v157 = vld [vmem:[%s141 + $0x58] sm:$0xff]
        %v158 = vld [vmem:[%s141 + $0x60] sm:$0xff]
        %v159 = vld [vmem:[%s141 + $0x68] sm:$0xff]
        %v160 = vld [vmem:[%s141 + $0x70] sm:$0xff]
        %v161 = vld [vmem:[%s141 + $0x78] sm:$0xff]
        %v162 = vld [vmem:[%s141 + $0x80] sm:$0xff]
        %v163 = vld [vmem:[%s141 + $0x88] sm:$0xff]
        %v164 = vld [vmem:[%s141 + $0x90] sm:$0xff]
        %v165 = vld [vmem:[%s141 + $0x98] sm:$0xff]
        %v166 = vld [vmem:[%s141 + $0xa0] sm:$0xff]
        %v167 = vld [vmem:[%s141 + $0xa8] sm:$0xff]
        %v168 = vld [vmem:[%s141 + $0xb0] sm:$0xff]
        %v169 = vld [vmem:[%s141 + $0xb8] sm:$0xff]
        %v170 = vld [vmem:[%s141 + $0xc0] sm:$0xff]
        %v171 = vld [vmem:[%s141 + $0xc8] sm:$0xff]
        %v172 = vld [vmem:[%s141 + $0xd0] sm:$0xff]
        %v173 = vld [vmem:[%s141 + $0xd8] sm:$0xff]
        %v174 = vld [vmem:[%s141 + $0xe0] sm:$0xff]
        %v175 = vld [vmem:[%s141 + $0xe8] sm:$0xff]
        %v176 = vld [vmem:[%s141 + $0xf0] sm:$0xff]
        %v181 = vunpack.c.l.b16 %v142
        %v182 = vunpack.c.h.b16 %v142
        %v183 = vunpack.c.l.b16 %v143
        %v184 = vunpack.c.h.b16 %v143
        %v185 = vunpack.c.l.b16 %v144
        %v186 = vunpack.c.h.b16 %v144
        %v187 = vunpack.c.l.b16 %v145
        %v188 = vunpack.c.h.b16 %v145
        %v189 = vpack.c.b16 %v183, %v181
        %v190 = vpack.c.b16 %v184, %v182
        %v191 = vpack.c.b16 %v187, %v185
        %v192 = vpack.c.b16 %v188, %v186
        %v226 = vunpack.c.l.b16 %v146
        %v227 = vunpack.c.h.b16 %v146
        %v228 = vunpack.c.l.b16 %v147
        %v229 = vunpack.c.h.b16 %v147
        %v230 = vunpack.c.l.b16 %v148
        %v231 = vunpack.c.h.b16 %v148
        %v232 = vunpack.c.l.b16 %v149
        %v233 = vunpack.c.h.b16 %v149
        %v234 = vunpack.c.l.b16 %v150
        %v235 = vunpack.c.h.b16 %v150
        %v236 = vunpack.c.l.b16 %v151
        %v237 = vunpack.c.h.b16 %v151
        %v238 = vunpack.c.l.b16 %v152
        %v239 = vunpack.c.h.b16 %v152
        %v240 = vunpack.c.l.b16 %v153
        %v241 = vunpack.c.h.b16 %v153
        %v242 = vunpack.c.l.b16 %v154
        %v243 = vunpack.c.h.b16 %v154
        %v244 = vunpack.c.l.b16 %v155
        %v245 = vunpack.c.h.b16 %v155
        %v246 = vunpack.c.l.b16 %v156
        %v247 = vunpack.c.h.b16 %v156
        %v248 = vunpack.c.l.b16 %v157
        %v249 = vunpack.c.h.b16 %v157
        %v250 = vunpack.c.l.b16 %v158
        %v251 = vunpack.c.h.b16 %v158
        %v252 = vunpack.c.l.b16 %v159
        %v253 = vunpack.c.h.b16 %v159
        %v254 = vunpack.c.l.b16 %v160
        %v255 = vunpack.c.h.b16 %v160
        %v256 = vunpack.c.l.b16 %v161
        %v257 = vunpack.c.h.b16 %v161
        %v258 = vunpack.c.l.b16 %v162
        %v259 = vunpack.c.h.b16 %v162
        %v260 = vunpack.c.l.b16 %v163
        %v261 = vunpack.c.h.b16 %v163
        %v262 = vunpack.c.l.b16 %v164
        %v263 = vunpack.c.h.b16 %v164
        %v264 = vunpack.c.l.b16 %v165
        %v265 = vunpack.c.h.b16 %v165
        %v266 = vunpack.c.l.b16 %v166
        %v267 = vunpack.c.h.b16 %v166
        %v268 = vunpack.c.l.b16 %v167
        %v269 = vunpack.c.h.b16 %v167
        %v270 = vunpack.c.l.b16 %v168
        %v271 = vunpack.c.h.b16 %v168
        %v272 = vunpack.c.l.b16 %v169
        %v273 = vunpack.c.h.b16 %v169
        %v274 = vunpack.c.l.b16 %v170
        %v275 = vunpack.c.h.b16 %v170
        %v276 = vunpack.c.l.b16 %v171
        %v277 = vunpack.c.h.b16 %v171
        %v278 = vunpack.c.l.b16 %v172
        %v279 = vunpack.c.h.b16 %v172
        %v280 = vunpack.c.l.b16 %v173
        %v281 = vunpack.c.h.b16 %v173
        %v282 = vunpack.c.l.b16 %v174
        %v283 = vunpack.c.h.b16 %v174
        %v284 = vunpack.c.l.b16 %v175
        %v285 = vunpack.c.h.b16 %v175
        %v286 = vunpack.c.l.b16 %v176
        %v287 = vunpack.c.h.b16 %v176
        %v288 = vpack.c.b16 %v228, %v226
        %v289 = vpack.c.b16 %v229, %v227
        %v290 = vpack.c.b16 %v232, %v230
        %v291 = vpack.c.b16 %v233, %v231
        %v292 = vpack.c.b16 %v236, %v234
        %v293 = vpack.c.b16 %v237, %v235
        %v294 = vpack.c.b16 %v240, %v238
        %v295 = vpack.c.b16 %v241, %v239
        %v296 = vpack.c.b16 %v244, %v242
        %v297 = vpack.c.b16 %v245, %v243
        %v298 = vpack.c.b16 %v248, %v246
        %v299 = vpack.c.b16 %v249, %v247
        %v300 = vpack.c.b16 %v252, %v250
        %v301 = vpack.c.b16 %v253, %v251
        %v302 = vpack.c.b16 %v256, %v254
        %v303 = vpack.c.b16 %v257, %v255
        %v304 = vpack.c.b16 %v260, %v258
        %v305 = vpack.c.b16 %v261, %v259
        %v306 = vpack.c.b16 %v264, %v262
        %v307 = vpack.c.b16 %v265, %v263
        %v308 = vpack.c.b16 %v268, %v266
        %v309 = vpack.c.b16 %v269, %v267
        %v310 = vpack.c.b16 %v272, %v270
        %v311 = vpack.c.b16 %v273, %v271
        %v312 = vpack.c.b16 %v276, %v274
        %v313 = vpack.c.b16 %v277, %v275
        %v314 = vpack.c.b16 %v280, %v278
        %v315 = vpack.c.b16 %v281, %v279
        %v316 = vpack.c.b16 %v284, %v282
        %v317 = vpack.c.b16 %v285, %v283
        %v318 = vpack.c.b16 %v286, %v286
        %v319 = vpack.c.b16 %v287, %v287
        %vm350 = vcmask 973824
        %v352 = vsel %vm350, %v190, 0
        %v355 = vsel %vm350, %v192, 0
        %vm357 = vcmask 1042432
        %vm358 = vcmask 1043456
        %v359 = vsel %vm357, 4294967295, 65535
        %v360 = vsel %vm358, %v359, 0
        %v362 = vand.u32 %v318, %v360
        %v365 = vand.u32 %v319, %v360
        %367 = vmatpush.bf16.msra.mxu0 %v302
        %368 = vmatpush.bf16.msra.mxu0 %v300
        %369 = vmatpush.bf16.msra.mxu0 %v298
        %370 = vmatpush.bf16.msra.mxu0 %v296
        %371 = vmatpush.bf16.msra.mxu0 %v294
        %372 = vmatpush.bf16.msra.mxu0 %v292
        %373 = vmatpush.bf16.msra.mxu0 %v290
        %374 = vmatpush.bf16.msra.mxu0 %v288
        %375 = vmatmul.bf16.gmra.mxu0 %v189
        %v376 = vpop.f32.mrf.mxu0
        %v377 = vadd.f32 0.0, %v376
        %v378 = vpop.f32.mrf.mxu0
        %v379 = vadd.f32 0.0, %v378
        %380 = vmatmul.bf16.gmra.mxu0 %v191
        %v381 = vpop.f32.mrf.mxu0
        %v382 = vadd.f32 0.0, %v381
        %v383 = vpop.f32.mrf.mxu0
        %v384 = vadd.f32 0.0, %v383
        %385 = vdwg.mxu0
        %386 = vmatpush.bf16.msra.mxu0 %v362
        %387 = vmatpush.bf16.msra.mxu0 %v316
        %388 = vmatpush.bf16.msra.mxu0 %v314
        %389 = vmatpush.bf16.msra.mxu0 %v312
        %390 = vmatpush.bf16.msra.mxu0 %v310
        %391 = vmatpush.bf16.msra.mxu0 %v308
        %392 = vmatpush.bf16.msra.mxu0 %v306
        %393 = vmatpush.bf16.msra.mxu0 %v304
        %394 = vmatmul.bf16.gmra.mxu0 %v352
        %v395 = vpop.f32.mrf.mxu0
        %v396 = vadd.f32 %v377, %v395
        %v397 = vpop.f32.mrf.mxu0
        %v398 = vadd.f32 %v379, %v397
        %399 = vmatmul.bf16.gmra.mxu0 %v355
        %v400 = vpop.f32.mrf.mxu0
        %v401 = vadd.f32 %v382, %v400
        %v402 = vpop.f32.mrf.mxu0
        %v403 = vadd.f32 %v384, %v402
        %404 = vdwg.mxu0
        %405 = vmatpush.bf16.msra.mxu0 %v303
        %406 = vmatpush.bf16.msra.mxu0 %v301
        %407 = vmatpush.bf16.msra.mxu0 %v299
        %408 = vmatpush.bf16.msra.mxu0 %v297
        %409 = vmatpush.bf16.msra.mxu0 %v295
        %410 = vmatpush.bf16.msra.mxu0 %v293
        %411 = vmatpush.bf16.msra.mxu0 %v291
        %412 = vmatpush.bf16.msra.mxu0 %v289
        %413 = vmatmul.bf16.gmra.mxu0 %v189
        %v414 = vpop.f32.mrf.mxu0
        %v415 = vadd.f32 0.0, %v414
        %v416 = vpop.f32.mrf.mxu0
        %v417 = vadd.f32 0.0, %v416
        %418 = vmatmul.bf16.gmra.mxu0 %v191
        %v419 = vpop.f32.mrf.mxu0
        %v420 = vadd.f32 0.0, %v419
        %v421 = vpop.f32.mrf.mxu0
        %v422 = vadd.f32 0.0, %v421
        %423 = vdwg.mxu0
        %424 = vmatpush.bf16.msra.mxu0 %v365
        %425 = vmatpush.bf16.msra.mxu0 %v317
        %426 = vmatpush.bf16.msra.mxu0 %v315
        %427 = vmatpush.bf16.msra.mxu0 %v313
        %428 = vmatpush.bf16.msra.mxu0 %v311
        %429 = vmatpush.bf16.msra.mxu0 %v309
        %430 = vmatpush.bf16.msra.mxu0 %v307
        %431 = vmatpush.bf16.msra.mxu0 %v305
        %432 = vmatmul.bf16.gmra.mxu0 %v352
        %v433 = vpop.f32.mrf.mxu0
        %v434 = vadd.f32 %v415, %v433
        %v435 = vpop.f32.mrf.mxu0
        %v436 = vadd.f32 %v417, %v435
        %437 = vmatmul.bf16.gmra.mxu0 %v355
        %v438 = vpop.f32.mrf.mxu0
        %v439 = vadd.f32 %v420, %v438
        %v440 = vpop.f32.mrf.mxu0
        %v441 = vadd.f32 %v422, %v440
        %442 = vdwg.mxu0
        %v443 = vmul.f32 %v396, %v396
        %v444 = vmul.f32 %v434, %v434
        %v445 = vmul.f32 %v398, %v398
        %v446 = vmul.f32 %v436, %v436
        %v447 = vmul.f32 %v401, %v401
        %v448 = vmul.f32 %v439, %v439
        %v449 = vmul.f32 %v403, %v403
        %v450 = vmul.f32 %v441, %v441
        %v451 = vadd.f32 %v443, %v447
        %v452 = vadd.f32 %v444, %v448
        %v453 = vadd.f32 %v445, %v449
        %v454 = vadd.f32 %v446, %v450
        %v455 = vrsqrt.pop %v451
        %v456 = vmul.f32 %v455, %v451
        %v457 = vmul.f32 %v456, %v455
        %v458 = vmul.f32 0.5, %v457
        %v459 = vsub.f32 1.5, %v458
        %v460 = vmul.f32 %v455, %v459
        %v461 = vmul.f32 %v451, %v460
        %vm462 = vcmp.eq.f32.partialorder %v451, inf
        %v463 = vsel %vm462, %v451, %v461
        %vm464 = vcmp.eq.f32.partialorder %v451, 0.0
        %v465 = vand.u32 %v451, 2147483648
        %v466 = vsel %vm464, %v465, %v463
        %v467 = vrsqrt.pop %v452
        %v468 = vmul.f32 %v467, %v452
        %v469 = vmul.f32 %v468, %v467
        %v470 = vmul.f32 0.5, %v469
        %v471 = vsub.f32 1.5, %v470
        %v472 = vmul.f32 %v467, %v471
        %v473 = vmul.f32 %v452, %v472
        %vm474 = vcmp.eq.f32.partialorder %v452, inf
        %v475 = vsel %vm474, %v452, %v473
        %vm476 = vcmp.eq.f32.partialorder %v452, 0.0
        %v477 = vand.u32 %v452, 2147483648
        %v478 = vsel %vm476, %v477, %v475
        %v479 = vrsqrt.pop %v453
        %v480 = vmul.f32 %v479, %v453
        %v481 = vmul.f32 %v480, %v479
        %v482 = vmul.f32 0.5, %v481
        %v483 = vsub.f32 1.5, %v482
        %v484 = vmul.f32 %v479, %v483
        %v485 = vmul.f32 %v453, %v484
        %vm486 = vcmp.eq.f32.partialorder %v453, inf
        %v487 = vsel %vm486, %v453, %v485
        %vm488 = vcmp.eq.f32.partialorder %v453, 0.0
        %v489 = vand.u32 %v453, 2147483648
        %v490 = vsel %vm488, %v489, %v487
        %v491 = vrsqrt.pop %v454
        %v492 = vmul.f32 %v491, %v454
        %v493 = vmul.f32 %v492, %v491
        %v494 = vmul.f32 0.5, %v493
        %v495 = vsub.f32 1.5, %v494
        %v496 = vmul.f32 %v491, %v495
        %v497 = vmul.f32 %v454, %v496
        %vm498 = vcmp.eq.f32.partialorder %v454, inf
        %v499 = vsel %vm498, %v454, %v497
        %vm500 = vcmp.eq.f32.partialorder %v454, 0.0
        %v501 = vand.u32 %v454, 2147483648
        %v502 = vsel %vm500, %v501, %v499
        %503 = vst [vmem:[%s136] sm:$0xff] %v466
        %504 = vst [vmem:[%s136 + $0x8] sm:$0xff] %v478
        %505 = vst [vmem:[%s136 + $0x10] sm:$0xff] %v490
        %506 = vst [vmem:[%s136 + $0x18] sm:$0xff] %v502
        %s507 = sand.u32 %s71, 1
        %s508 = scalar_lea.sflag [#allocation3], %s507
        %s509 = sand.u32 %s71, 1
        %s510 = smul.addr %s509, 32
        %s511 = scalar_lea.vmem [#allocation2], %s510
        // Predicated region
        $region29: #{tpu_custom_call.1} parent=27 // pred_check
          %p512 = pneg %p81
        $region30: #{tpu_custom_call.1} parent=27 // pred_check_branch
          %514 = sbr.rel (%p512) target = $region32
        $region31: #{tpu_custom_call.1} parent=27 // pred_region
          %516 = vsyncadd %s508, 0
          %s517 = smul.addr %s16, 4
          %s518 = smul.addr %s517, 8
          %s519 = scalar_lea.hbm %s2, %s518
          %s520 = sshll.u32 %s511, 4
          %s521 = int_to_ptr.vmem [resolvable:$true] %s520
          %s522 = sshll.u32 %s519, 4
          %s523 = int_to_ptr.hbm [resolvable:$true] %s522
          %528 = dma.vmem_to_hbm [thread:$0]  %s521, 512, %s523, %s508, 256, 256, 16
        $region32: #{tpu_custom_call.1} parent=27 // pred_fallthru
          _
      $region28: #{tpu_custom_call.1} parent=5 // pred_fallthru
        _
      %p529 = scmp.le.s32.totalorder 2, %s11
      // Predicated region
      $region33: #{tpu_custom_call.1} parent=5 // pred_check
        %p530 = pneg %p529
      $region34: #{tpu_custom_call.1} parent=5 // pred_check_branch
        %532 = sbr.rel (%p530) target = $region36
      $region35: #{tpu_custom_call.1} parent=5 // pred_region
        %s533 = ssub.s32 %s11, 2
        // Predicated region
        $region37: #{tpu_custom_call.1} parent=35 // pred_check
          %p534 = pneg %p87
        $region38: #{tpu_custom_call.1} parent=35 // pred_check_branch
          %536 = sbr.rel (%p534) target = $region40
        $region39: #{tpu_custom_call.1} parent=35 // pred_region
          %s537 = sand.u32 %s72, 1
          %s538 = scalar_lea.sflag [#allocation3], %s537
          %s539 = sand.u32 %s72, 1
          %s540 = smul.addr %s539, 32
          %s541 = scalar_lea.vmem [#allocation2], %s540
          %543 = dma.done %s538, 512
        $region40: #{tpu_custom_call.1} parent=35 // pred_fallthru
          _
      $region36: #{tpu_custom_call.1} parent=5 // pred_fallthru
        _
    $region6: #{tpu_custom_call.1} parent=1 // loop_footer
      %s15 = sadd.s32 1, %s11
    $region7: #{tpu_custom_call.1} parent=1 // loop_footer_branch
      %10 = sbr.rel target = $region3
    $region8: #{tpu_custom_call.1} parent=1 // loop_exit
      _
    %544 = vsyncpa [#allocation3], 1
    %s545 = scalar_lea.sflag [#allocation3], 1
    %546 = vsyncpa %s545, 1

</llo_original>
